<compile_context>
chip_gen: v7x
topology: tpu7x:2x2x1
jax: 0.10.0
libtpu: 0.0.40
codegen_flags: <defaults>
</compile_context>

<pallas_src>
import jax
import jax.numpy as jnp
from jax.experimental import pallas as pl
from jax.experimental.pallas import tpu as pltpu


def _logreg_kernel(x_ref, w_ref, b_ref, o_ref):
    # x_ref: (TB, D) VMEM (streamed), w_ref: (1, D) VMEM (resident),
    # b_ref: (1, 1) SMEM scalar, o_ref: (TB, 1) VMEM.
    x = x_ref[...].astype(jnp.float32)
    w = w_ref[...].astype(jnp.float32)            # (1, D) broadcasts over TB rows
    # VPU multiply + XLU lane reduction; strictly per-row, so garbage rows of a
    # ragged last tile cannot contaminate valid rows (their stores are masked).
    z = jnp.sum(x * w, axis=-1, keepdims=True)    # (TB, 1), f32 accumulation
    z = z + b_ref[0, 0]
    # exp lands on the (idle) EUP slot; 1/(1+exp(-z)) saturates correctly at +/-inf.
    o_ref[...] = (1.0 / (1.0 + jnp.exp(-z))).astype(o_ref.dtype)


def _round_up(n, m):
    return ((n + m - 1) // m) * m


def _vmem_limit_bytes():
    """Generation-aware VMEM limit (v5e/v6e: 128 MiB physical, v7x: 64 MiB)."""
    try:
        physical = int(pltpu.get_tpu_info().vmem_capacity_bytes)
    except Exception:
        physical = 64 * 1024 * 1024              # conservative floor (v7x)
    # Use at most 3/4 of physical, capped at 64 MiB: v7x -> 48 MiB, v5e/v6e -> 64 MiB.
    return min(physical * 3 // 4, 64 * 1024 * 1024)


def _choose_batch_tile(batch, feat_dim, itemsize, vmem_limit):
    """Largest 16-aligned batch tile whose double-buffered blocks fit the budget.

    Per-row VMEM cost (double-buffered):
      x block   : 2 * D * itemsize bytes
      out block : 2 * 512 bytes   ((tb, 1) f32 pads to 128 lanes -> 512 B/row/buf)
    """
    headroom = 4 * 1024 * 1024                   # resident weight + compiler scratch
    budget = max(vmem_limit - headroom, 1 * 1024 * 1024)
    per_row = 2 * feat_dim * itemsize + 2 * 512
    tb = max(16, (budget // per_row) // 16 * 16)
    # Keep at least two grid tiles so v7x's two TensorCores both get work
    # (no-op on single-TC v5e/v6e); never exceed the (16-rounded) whole batch.
    two_tile_cap = max(16, _round_up(pl.cdiv(batch, 2), 16))
    tb = min(tb, two_tile_cap, _round_up(batch, 16))
    return max(tb, 16)


def logistic_regression(x, weight, bias, *, block_batch=None):
    """y = sigmoid(x @ W^T + b). x: (B, D); weight: (1, D) nn.Linear layout; bias: (1,)."""
    B, D = x.shape
    w = weight.reshape(1, D).astype(jnp.float32)      # lane-dense, stays resident
    b = bias.reshape(1, 1).astype(jnp.float32)        # scalar, lives in SMEM

    if x.dtype not in (jnp.float32, jnp.bfloat16):
        x = x.astype(jnp.float32)                     # stream native dtype otherwise

    vmem_limit = _vmem_limit_bytes()
    tb = block_batch if block_batch is not None else _choose_batch_tile(
        B, D, x.dtype.itemsize, vmem_limit)

    # No jnp.pad / out[:B]: Pallas masks the ragged last tile (block (tb, D) keeps
    # the second-to-last dim 16-aligned and the last dim equal to full D).
    grid = (pl.cdiv(B, tb),)

    cost = pl.CostEstimate(
        flops=2 * B * D,
        transcendentals=B,
        bytes_accessed=B * D * x.dtype.itemsize + B * 4 + D * 4 + 4,
    )

    # TODO(synk): if D ever grows so large that even a (16, D) block cannot fit
    # VMEM, add a second "arbitrary" grid axis over D with an f32 accumulator
    # scratch (init/finalize under pl.when).
    out = pl.pallas_call(
        _logreg_kernel,
        out_shape=jax.ShapeDtypeStruct((B, 1), jnp.float32),
        grid_spec=pltpu.PrefetchScalarGridSpec(
            num_scalar_prefetch=0,
            grid=grid,
            in_specs=[
                # Streamed x tiles. (Sweep pipeline_mode=pl.Buffered(3) here only
                # if a trace ever shows exposed DMA issue latency at tile edges.)
                pl.BlockSpec((tb, D), lambda i: (i, 0)),
                pl.BlockSpec((1, D), lambda i: (0, 0)),        # resident weight
                pl.BlockSpec(memory_space=pltpu.MemorySpace.SMEM),
            ],
            out_specs=pl.BlockSpec((tb, 1), lambda i: (i, 0)),
        ),
        compiler_params=pltpu.CompilerParams(
            dimension_semantics=("parallel",),   # shard batch tiles across TCs (v7x)
            vmem_limit_bytes=vmem_limit,
        ),
        cost_estimate=cost,
    )(x, w, b)
    return out


if __name__ == "__main__":
    key = jax.random.PRNGKey(0)
    kx, kw, kb, kx2 = jax.random.split(key, 4)

    # Small demo shape consistent with the module (adult-income style features).
    batch, input_dim = 8, 32
    x = jax.random.normal(kx, (batch, input_dim), dtype=jnp.float32)
    bound = 1.0 / (input_dim ** 0.5)
    weight = jax.random.uniform(kw, (1, input_dim), minval=-bound, maxval=bound,
                                dtype=jnp.float32)
    bias = jax.random.uniform(kb, (1,), minval=-bound, maxval=bound,
                              dtype=jnp.float32)

    out = jax.block_until_ready(logistic_regression(x, weight, bias))
    ref = jax.nn.sigmoid(x @ weight.T + bias)
    assert out.shape == (batch, 1)
    assert jnp.allclose(out, ref, atol=1e-5), "mismatch vs reference (small)"

    # Second check: multi-tile grid with an un-padded ragged last tile.
    batch2 = 300
    x2 = jax.random.normal(kx2, (batch2, input_dim), dtype=jnp.float32)
    out2 = jax.block_until_ready(
        logistic_regression(x2, weight, bias, block_batch=128))
    ref2 = jax.nn.sigmoid(x2 @ weight.T + bias)
    assert out2.shape == (batch2, 1)
    assert jnp.allclose(out2, ref2, atol=1e-5), "mismatch vs reference (ragged)"

    print("KERNEL_OK")
</pallas_src>

<mosaic_0001>
module attributes {stable_mosaic.version = 11 : i64} {
  func.func @_logreg_kernel(%arg0: i32, %arg1: memref<16x32xf32, #tpu.memory_space<vmem>>, %arg2: memref<1x32xf32, #tpu.memory_space<vmem>>, %arg3: memref<1x1xf32, #tpu.memory_space<smem>>, %arg4: memref<16x1xf32, #tpu.memory_space<vmem>>) attributes {dimension_semantics = [#tpu.dimension_semantics<parallel>], iteration_bounds = array<i64: 1>, scalar_prefetch = 0 : i64, scratch_operands = 0 : i64, tpu.core_type = #tpu.core_type<tc>, window_params = [{transform_indices = @transform_0, window_bounds = array<i64: 16, 32>}, {pipeline_mode = #tpu.pipeline_mode<synchronous>, transform_indices = @transform_1, window_bounds = array<i64: 1, 32>}, {transform_indices = @transform_2, window_bounds = array<i64: 1, 1>}, {transform_indices = @transform_3, window_bounds = array<i64: 16, 1>}]} {
    %c0 = arith.constant 0 : index
    %c0_0 = arith.constant 0 : index
    %0 = vector.load %arg1[%c0, %c0_0] : memref<16x32xf32, #tpu.memory_space<vmem>>, vector<16x32xf32>
    %c0_1 = arith.constant 0 : index
    %c0_2 = arith.constant 0 : index
    %1 = vector.load %arg2[%c0_1, %c0_2] : memref<1x32xf32, #tpu.memory_space<vmem>>, vector<1x32xf32>
    %2 = vector.broadcast %1 : vector<1x32xf32> to vector<16x32xf32>
    %3 = arith.mulf %0, %2 : vector<16x32xf32>
    %cst = arith.constant dense<0.000000e+00> : vector<16xf32>
    %4 = vector.multi_reduction <add>, %3, %cst [1] : vector<16x32xf32> to vector<16xf32>
    %5 = vector.shape_cast %4 : vector<16xf32> to vector<16x1xf32>
    %c0_3 = arith.constant 0 : index
    %c0_4 = arith.constant 0 : index
    %6 = memref.load %arg3[%c0_3, %c0_4] : memref<1x1xf32, #tpu.memory_space<smem>>
    %7 = vector.broadcast %6 : f32 to vector<16x1xf32>
    %8 = arith.addf %5, %7 : vector<16x1xf32>
    %cst_5 = arith.constant 0.000000e+00 : f32
    %9 = vector.broadcast %cst_5 : f32 to vector<16x1xf32>
    %10 = arith.subf %9, %8 : vector<16x1xf32>
    %11 = math.exp %10 : vector<16x1xf32>
    %cst_6 = arith.constant 1.000000e+00 : f32
    %12 = vector.broadcast %cst_6 : f32 to vector<16x1xf32>
    %13 = arith.addf %12, %11 : vector<16x1xf32>
    %cst_7 = arith.constant 1.000000e+00 : f32
    %14 = vector.broadcast %cst_7 : f32 to vector<16x1xf32>
    %15 = arith.divf %14, %13 : vector<16x1xf32>
    %c0_8 = arith.constant 0 : index
    %c0_9 = arith.constant 0 : index
    %16 = vector.load %arg4[%c0_8, %c0_9] : memref<16x1xf32, #tpu.memory_space<vmem>>, vector<16x1xf32>
    tpu.vector_store %arg4[%c0_8, %c0_9], %15 {strides = array<i32>} : memref<16x1xf32, #tpu.memory_space<vmem>>, vector<16x1xf32>,
    return
  }
  func.func @transform_0(%arg0: i32) -> (i32, i32) {
    %c0_i32 = arith.constant 0 : i32
    %c0_i32_0 = arith.constant 0 : i32
    return %arg0, %c0_i32 : i32, i32
  }
  func.func @transform_1(%arg0: i32) -> (i32, i32) {
    %c0_i32 = arith.constant 0 : i32
    %c0_i32_0 = arith.constant 0 : i32
    %c0_i32_1 = arith.constant 0 : i32
    return %c0_i32, %c0_i32_0 : i32, i32
  }
  func.func @transform_2(%arg0: i32) -> (i32, i32) {
    %c0_i32 = arith.constant 0 : i32
    %c0_i32_0 = arith.constant 0 : i32
    %c0_i32_1 = arith.constant 0 : i32
    return %c0_i32, %c0_i32_0 : i32, i32
  }
  func.func @transform_3(%arg0: i32) -> (i32, i32) {
    %c0_i32 = arith.constant 0 : i32
    %c0_i32_0 = arith.constant 0 : i32
    return %arg0, %c0_i32 : i32, i32
  }
}

</mosaic_0001>

<llo_original>
// kernel: tpu_custom_call.1
$region0: #{tpu_custom_call.1}
  #allocation0 [shape = 'u32[]', space=smem, size = 0x4, offset = 0x4, fixed_abs, tag = 'smem constant byte address 0x4 - core index']
  #allocation1 [shape = 'u32[144,128]{1,0:T(1,128)}', space=vmem, size = 0x12000, scoped, tag = 'internal scratch']
  #allocation2 [shape = 'f32[1,1]{1,0:T(1,128)S(6)}', space=smem, size = 0x200, scoped, tag = 'scoped memory for tpu_custom_call.1']
  %s0 = inlined_call_operand.hbm [shape: f32[8,32], index: 0, kind: input, shape index: {}]
  %s1 = inlined_call_operand.vmem [shape: f32[1,32], index: 1, kind: input, shape index: {}]
  %s2 = inlined_call_operand.<no memory space> [shape: f32[1,1], index: 2, kind: input, shape index: {}]
  %s3 = inlined_call_operand.vmem [shape: f32[8,1], index: 3, kind: output, shape index: {}]
  %s4 = sld [smem:[#allocation0]]
  $region60: #{tpu_custom_call.1} parent=0
    _
  %s6 = ssub.s32 1, %s4
  %s7 = scalar_select 0, %s6, %s4
  %8 = sst [smem:[#allocation2]] %s2
  $region1: #{tpu_custom_call.1} parent=0
    #allocation3 [shape = 'u8[8192]{0}', space=vmem, size = 0x2000, scoped, tag = 'input window, operand 0, single buffered']
    #allocation4 [shape = 's32[1]{0}', space=sflag, size = 0x4, scoped, tag = 'scoped memory for tpu_custom_call.1']
    #allocation5 [shape = 'u8[8192]{0}', space=vmem, size = 0x2000, scoped, tag = 'output window, operand 0, single buffered']
    %9 = vsyncpa [#allocation4], 0
    // Predicated region
    $region2: #{tpu_custom_call.1} parent=1 // pred_check
      _
    $region3: #{tpu_custom_call.1} parent=1 // pred_check_branch
      %11 = sbr.rel (0) target = $region5
    $region4: #{tpu_custom_call.1} parent=1 // pred_region
      %s13 = ssub.s32 256, 128
      %14 = vsyncadd [#allocation4], %s13
      %s15 = sshll.u32 [#allocation3], 4
      %s16 = int_to_ptr.vmem [resolvable:$true] %s15
      %21 = dma.hbm_to_vmem [thread:$0]  %s0, 128, %s16, [#allocation4], 128, 128, 8
    $region5: #{tpu_custom_call.1} parent=1 // pred_fallthru
      _
    // Predicated region
    $region6: #{tpu_custom_call.1} parent=1 // pred_check
      _
    $region7: #{tpu_custom_call.1} parent=1 // pred_check_branch
      %23 = sbr.rel (0) target = $region9
    $region8: #{tpu_custom_call.1} parent=1 // pred_region
      _
    $region9: #{tpu_custom_call.1} parent=1 // pred_fallthru
      _
    // Predicated region
    $region10: #{tpu_custom_call.1} parent=1 // pred_check
      _
    $region11: #{tpu_custom_call.1} parent=1 // pred_check_branch
      %25 = sbr.rel (0) target = $region13
    $region12: #{tpu_custom_call.1} parent=1 // pred_region
      _
    $region13: #{tpu_custom_call.1} parent=1 // pred_fallthru
      _
    // Predicated region
    $region14: #{tpu_custom_call.1} parent=1 // pred_check
      _
    $region15: #{tpu_custom_call.1} parent=1 // pred_check_branch
      %27 = sbr.rel (0) target = $region17
    $region16: #{tpu_custom_call.1} parent=1 // pred_region
      %28 = dma.done [#allocation4], 256
    $region17: #{tpu_custom_call.1} parent=1 // pred_fallthru
      _
    %v29 = vld [vmem:[#allocation3] sm:$0xff]
    %v30 = vld [vmem:[#allocation3 + $0x8] sm:$0xff]
    %v31 = vld [vmem:[%s1] sm:$0x1]
    %v33 = vlaneseq
    %v34 = vshrl.u32 %v33, 7
    %v35 = vsub.s32 0, %v34
    %v36 = vrot.slane %v31, %v35
    %v38 = vmul.f32 %v29, %v36
    %v39 = vmul.f32 %v30, %v36
    %vm40 = vcmask 261120
    %v41 = vsel %vm40, %v38, 0.0
    %42 = vadd.xlane.f32.xlu0 %v41
    %v43 = vpop.xlane.xlu0 %42
    %v44 = vsel %vm40, %v39, 0.0
    %45 = vadd.xlane.f32.xlu0 %v44
    %v46 = vpop.xlane.xlu0 %45
    %s47 = sld [smem:[#allocation2]]
    %v48 = vstv %s47
    %v49 = vadd.f32 %v43, %v48
    %v50 = vadd.f32 %v46, %v48
    %v51 = vsub.f32 0.0, %v49
    %v52 = vsub.f32 0.0, %v50
    %v53 = vmul.f32 %v51, 1.442695
    %v54 = vpow.pop %v53
    %v55 = vmul.f32 %v52, 1.442695
    %v56 = vpow.pop %v55
    %v57 = vadd.f32 %v54, 1.0
    %v58 = vadd.f32 %v56, 1.0
    %v59 = vrcp.pop %v57
    %v60 = vmul.f32 1.0, %v59
    %v61 = vrcp.pop %v58
    %v62 = vmul.f32 1.0, %v61
    %vm63 = vcmask 7168
    %64 = vst.msk [vmem:[#allocation5] sm:$0xff] %vm63, %v60
    %65 = vst.msk [vmem:[#allocation5 + $0x8] sm:$0xff] %vm63, %v62
    // Predicated region
    $region18: #{tpu_custom_call.1} parent=1 // pred_check
      _
    $region19: #{tpu_custom_call.1} parent=1 // pred_check_branch
      %67 = sbr.rel (0) target = $region21
    $region20: #{tpu_custom_call.1} parent=1 // pred_region
      // Predicated region
      $region22: #{tpu_custom_call.1} parent=20 // pred_check
        _
      $region23: #{tpu_custom_call.1} parent=20 // pred_check_branch
        %69 = sbr.rel (0) target = $region25
      $region24: #{tpu_custom_call.1} parent=20 // pred_region
        // Predicated region
        $region26: #{tpu_custom_call.1} parent=24 // pred_check
          _
        $region27: #{tpu_custom_call.1} parent=24 // pred_check_branch
          %71 = sbr.rel (0) target = $region29
        $region28: #{tpu_custom_call.1} parent=24 // pred_region
          // Predicated region
          $region41: #{tpu_custom_call.1} parent=28 // pred_check
            _
          $region42: #{tpu_custom_call.1} parent=28 // pred_check_branch
            %86 = sbr.rel (0) target = $region44
          $region43: #{tpu_custom_call.1} parent=28 // pred_region
            loop: start=0, step=1, limit=1
            $region45: #{tpu_custom_call.1} parent=43 // loop_pre_header
              _
            $region46: #{tpu_custom_call.1} parent=43 // loop_header
              %s88 = sphi 0, %s92
              %p89 = scmp.ge.s32.totalorder %s88, 1
              %s93 = sphi [#allocation5], [#allocation5]
              %s94 = sphi %s3, %s3
            $region47: #{tpu_custom_call.1} parent=43 // loop_header_branch
              %91 = sbr.rel (%p89) target = $region51
            $region48: #{tpu_custom_call.1} parent=43 // loop_body
              %v95 = vld [vmem:[%s93] sm:$0xff]
              %96 = vst [vmem:[%s94] sm:$0xff] %v95
            $region49: #{tpu_custom_call.1} parent=43 // loop_footer
              %s92 = sadd.s32 1, %s88
            $region50: #{tpu_custom_call.1} parent=43 // loop_footer_branch
              %87 = sbr.rel target = $region46
            $region51: #{tpu_custom_call.1} parent=43 // loop_exit
              _
          $region44: #{tpu_custom_call.1} parent=28 // pred_fallthru
            _
          // Predicated region
          $region52: #{tpu_custom_call.1} parent=28 // pred_check
            _
          $region53: #{tpu_custom_call.1} parent=28 // pred_check_branch
            %98 = sbr.rel target = $region55
          $region54: #{tpu_custom_call.1} parent=28 // pred_region
            _
          $region55: #{tpu_custom_call.1} parent=28 // pred_fallthru
            _
        $region29: #{tpu_custom_call.1} parent=24 // pred_fallthru
          _
        // Predicated region
        $region30: #{tpu_custom_call.1} parent=24 // pred_check
          _
        $region31: #{tpu_custom_call.1} parent=24 // pred_check_branch
          %73 = sbr.rel target = $region33
        $region32: #{tpu_custom_call.1} parent=24 // pred_region
          loop: start=0, step=1, limit=1
          $region34: #{tpu_custom_call.1} parent=32 // loop_pre_header
            _
          $region35: #{tpu_custom_call.1} parent=32 // loop_header
            %s76 = sphi 0, %s80
            %p77 = scmp.ge.s32.totalorder %s76, 1
            %s81 = sphi [#allocation5], [#allocation5]
            %s82 = sphi %s3, %s3
          $region36: #{tpu_custom_call.1} parent=32 // loop_header_branch
            %79 = sbr.rel (%p77) target = $region40
          $region37: #{tpu_custom_call.1} parent=32 // loop_body
            %v83 = vld [vmem:[%s81] sm:$0xff]
            %84 = vst [vmem:[%s82] sm:$0xff] %v83
          $region38: #{tpu_custom_call.1} parent=32 // loop_footer
            %s80 = sadd.s32 1, %s76
          $region39: #{tpu_custom_call.1} parent=32 // loop_footer_branch
            %75 = sbr.rel target = $region35
          $region40: #{tpu_custom_call.1} parent=32 // loop_exit
            _
        $region33: #{tpu_custom_call.1} parent=24 // pred_fallthru
          _
      $region25: #{tpu_custom_call.1} parent=20 // pred_fallthru
        _
      %99 = vnop
    $region21: #{tpu_custom_call.1} parent=1 // pred_fallthru
      _
    // Predicated region
    $region56: #{tpu_custom_call.1} parent=1 // pred_check
      _
    $region57: #{tpu_custom_call.1} parent=1 // pred_check_branch
      %101 = sbr.rel (0) target = $region59
    $region58: #{tpu_custom_call.1} parent=1 // pred_region
      _
    $region59: #{tpu_custom_call.1} parent=1 // pred_fallthru
      _
    %102 = vsyncpa [#allocation4], 1

</llo_original>
